<compile_context>
chip_gen: v7x
topology: tpu7x:2x2x1
jax: 0.10.0
libtpu: 0.0.40
codegen_flags: <defaults>
</compile_context>

<pallas_src>
import jax
import jax.numpy as jnp
from jax import lax
from jax.experimental import pallas as pl
from jax.experimental.pallas import tpu as pltpu


def mlp_kernel(x_ref, w1_ref, b1_ref, w2_ref, b2_ref, o_ref):
    # x_ref : (TB, D)  f32   (cast to bf16 in-kernel, hidden under DMA)
    # w1_ref: (D, H)   bf16  (grid-invariant, single-buffered, VMEM-resident)
    # b1_ref: (1, H)   f32
    # w2_ref: (1, H)   bf16
    # b2_ref: (1,)     f32 in SMEM
    # o_ref : (1, TB)  f32   (lane-dense output row for this batch tile)

    # fc1 on the MXU: bf16 operands, f32 accumulation.
    x_bf16 = x_ref[...].astype(jnp.bfloat16)
    h = jnp.dot(x_bf16, w1_ref[...], preferred_element_type=jnp.float32)
    # bias + ReLU on the f32 accumulator (VPU) — safe path on v5e too.
    h = jnp.maximum(h + b1_ref[...], 0.0)                       # (TB, H) f32

    # fc2 (output width 1) as a transposed MXU matmul:
    #   (1, H) x (TB, H) contracting on H  ->  (1, TB)
    # This produces the lane-dense output row directly (MXU is idle after the
    # tiny-K fc1, so it's free) and avoids the XLU reduce + relayout epilogue.
    y = lax.dot_general(
        w2_ref[...], h.astype(jnp.bfloat16),
        dimension_numbers=(((1,), (1,)), ((), ())),
        preferred_element_type=jnp.float32,
    )                                                            # (1, TB) f32

    o_ref[...] = (y + b2_ref[0]).astype(o_ref.dtype)


def _round_up(n, m):
    return ((n + m - 1) // m) * m


def _lane_pad(n):
    return _round_up(n, 128)


def _vmem_tile_bytes(block_b, d, h):
    """Estimated resident VMEM per grid step (lane-padded layouts)."""
    ld, lh = _lane_pad(d), _lane_pad(h)
    x_tile = block_b * ld * 4 * 2          # f32 x tile, double-buffered
    h_f32 = block_b * lh * 4               # fc1 f32 accumulator
    h_bf16 = block_b * lh * 2              # bf16 copy feeding the fc2 matmul
    out_tile = 8 * block_b * 4 * 2         # (1, TB) sublane-padded, 2 buffers
    weights = ld * lh * 2 + 8 * lh * 4 + 8 * lh * 2   # w1 bf16 + b1 f32 + w2 bf16
    return x_tile + h_f32 + h_bf16 + out_tile + weights


def net_forward(x, w1, b1, w2, b2, *, block_b=None):
    """Forward pass of Net.

    x  : (B, input_dim)        float32
    w1 : (input_dim, hidden)   float32   (transposed vs. PyTorch fc1.weight)
    b1 : (hidden,)             float32
    w2 : (hidden, 1)           float32   (transposed vs. PyTorch fc2.weight)
    b2 : (1,)                  float32
    returns (B, 1) float32
    """
    B, D = x.shape
    H = w1.shape[1]

    if block_b is None:
        # Target ~1 MiB of x DMA per grid step: amortizes the ~0.35 us/step
        # overhead and sits near the measured HBM-roofline knee.
        target_bytes = 1 << 20
        block_b = max(128, _round_up(target_bytes // (4 * D), 128))
    block_b = _round_up(block_b, 128)

    b_aligned = _round_up(B, 128)
    block_b = min(block_b, b_aligned)
    # v7x megacore: keep >= 2 grid steps so both TensorCores get work
    # (no effect on single-TC v5e/v6e).
    if b_aligned >= 256:
        block_b = min(block_b, _round_up((b_aligned + 1) // 2, 128))
    # Keep the per-step footprint comfortably under v7x's 64 MiB VMEM.
    while block_b > 128 and _vmem_tile_bytes(block_b, D, H) > 40 * (1 << 20):
        block_b = max(128, _round_up(block_b // 2, 128))

    num_tiles = pl.cdiv(B, block_b)
    b_pad = num_tiles * block_b

    # Weights are tiny: cast once outside. x is NOT cast or padded here (no
    # extra HBM passes); the ragged last block is handled by Pallas.
    w1_bf16 = w1.astype(jnp.bfloat16)
    b1_row = b1.reshape(1, H).astype(jnp.float32)
    w2_row = w2.reshape(1, H).astype(jnp.bfloat16)
    b2_s = b2.reshape(-1).astype(jnp.float32)      # (1,) scalar in SMEM

    footprint = _vmem_tile_bytes(block_b, D, H)
    vmem_limit = int(min(48 * (1 << 20), max(2 * footprint, 8 * (1 << 20))))

    out = pl.pallas_call(
        mlp_kernel,
        out_shape=jax.ShapeDtypeStruct((1, b_pad), jnp.float32),
        grid=(num_tiles,),
        in_specs=[
            # Batch tile: new block per grid step (pipelined; last block may
            # be ragged — Pallas clips the boundary DMA).
            pl.BlockSpec((block_b, D), lambda i: (i, 0)),
            # Weights / biases: constant index_map -> DMA once, VMEM-resident;
            # single-buffered (no need for a double buffer on constant blocks).
            pl.BlockSpec((D, H), lambda i: (0, 0), pipeline_mode=pl.Buffered(1)),
            pl.BlockSpec((1, H), lambda i: (0, 0), pipeline_mode=pl.Buffered(1)),
            pl.BlockSpec((1, H), lambda i: (0, 0), pipeline_mode=pl.Buffered(1)),
            # b2 scalar lives in SMEM (no padded VMEM tile, no extra DMA pair).
            pl.BlockSpec(memory_space=pltpu.MemorySpace.SMEM),
        ],
        # Lane-dense output row per tile.
        out_specs=pl.BlockSpec((1, block_b), lambda i: (0, i)),
        compiler_params=pltpu.CompilerParams(
            # Batch tiles are independent -> shard across TCs on v7x.
            dimension_semantics=("parallel",),
            vmem_limit_bytes=vmem_limit,
        ),
    )(x, w1_bf16, b1_row, w2_row, b2_s)

    return out.reshape(b_pad)[:B].reshape(B, 1)


def init_params(key, input_dim, hidden_neuron):
    """Deterministic parameter init (uniform, a la PyTorch Linear bounds)."""
    k1, k2, k3, k4 = jax.random.split(key, 4)
    bound1 = 1.0 / jnp.sqrt(input_dim)
    bound2 = 1.0 / jnp.sqrt(hidden_neuron)
    w1 = jax.random.uniform(k1, (input_dim, hidden_neuron), jnp.float32,
                            -bound1, bound1)
    b1 = jax.random.uniform(k2, (hidden_neuron,), jnp.float32,
                            -bound1, bound1)
    w2 = jax.random.uniform(k3, (hidden_neuron, 1), jnp.float32,
                            -bound2, bound2)
    b2 = jax.random.uniform(k4, (1,), jnp.float32, -bound2, bound2)
    return w1, b1, w2, b2


if __name__ == "__main__":
    input_dim = 32
    hidden_neuron = 32

    key = jax.random.PRNGKey(0)
    kx, kp = jax.random.split(key)
    w1, b1, w2, b2 = init_params(kp, input_dim, hidden_neuron)

    def reference(x):
        return jnp.maximum(x @ w1 + b1, 0.0) @ w2 + b2

    # Case 1: tiny batch (single ragged tile, no wrapper pad).
    x_small = jax.random.normal(kx, (8, input_dim), jnp.float32)
    out_small = jax.block_until_ready(net_forward(x_small, w1, b1, w2, b2))
    assert out_small.shape == (8, 1)
    assert jnp.allclose(out_small, reference(x_small), atol=3e-2, rtol=3e-2)

    # Case 2: ragged multi-tile batch (auto block_b -> 2 tiles of 256, ragged
    # tail handled by Pallas boundary clipping; exercises pipelining + slice).
    x_big = jax.random.normal(kx, (300, input_dim), jnp.float32)
    out_big = jax.block_until_ready(net_forward(x_big, w1, b1, w2, b2))
    assert out_big.shape == (300, 1)
    assert jnp.allclose(out_big, reference(x_big), atol=3e-2, rtol=3e-2)

    print("KERNEL_OK")
</pallas_src>

<mosaic_0001>
module attributes {stable_mosaic.version = 11 : i64} {
  func.func @mlp_kernel(%arg0: i32, %arg1: memref<128x32xf32, #tpu.memory_space<vmem>>, %arg2: memref<32x32xbf16, #tpu.memory_space<vmem>>, %arg3: memref<1x32xf32, #tpu.memory_space<vmem>>, %arg4: memref<1x32xbf16, #tpu.memory_space<vmem>>, %arg5: memref<1xf32, #tpu.memory_space<smem>>, %arg6: memref<1x128xf32, #tpu.memory_space<vmem>>) attributes {dimension_semantics = [#tpu.dimension_semantics<parallel>], iteration_bounds = array<i64: 1>, scalar_prefetch = 0 : i64, scratch_operands = 0 : i64, tpu.core_type = #tpu.core_type<tc>, window_params = [{transform_indices = @transform_0, window_bounds = array<i64: 128, 32>}, {pipeline_mode = #tpu.pipeline_mode<synchronous>, transform_indices = @transform_1, window_bounds = array<i64: 32, 32>}, {pipeline_mode = #tpu.pipeline_mode<synchronous>, transform_indices = @transform_2, window_bounds = array<i64: 1, 32>}, {pipeline_mode = #tpu.pipeline_mode<synchronous>, transform_indices = @transform_3, window_bounds = array<i64: 1, 32>}, {transform_indices = @transform_4, window_bounds = array<i64: 1>}, {transform_indices = @transform_5, window_bounds = array<i64: 1, 128>}]} {
    %c0 = arith.constant 0 : index
    %c0_0 = arith.constant 0 : index
    %0 = vector.load %arg1[%c0, %c0_0] : memref<128x32xf32, #tpu.memory_space<vmem>>, vector<128x32xf32>
    %1 = arith.truncf %0 : vector<128x32xf32> to vector<128x32xbf16>
    %c0_1 = arith.constant 0 : index
    %c0_2 = arith.constant 0 : index
    %2 = vector.load %arg2[%c0_1, %c0_2] : memref<32x32xbf16, #tpu.memory_space<vmem>>, vector<32x32xbf16>
    %cst = arith.constant dense<0.000000e+00> : vector<128x32xf32>
    %3 = tpu.matmul %1, %2, %cst {dimension_numbers = #tpu.dot_dimension_numbers<[1], [0], [0], [1], [0, 0, 1, 1], [], []>} : vector<128x32xbf16>, vector<32x32xbf16>, vector<128x32xf32> -> vector<128x32xf32>
    %c0_3 = arith.constant 0 : index
    %c0_4 = arith.constant 0 : index
    %4 = vector.load %arg3[%c0_3, %c0_4] : memref<1x32xf32, #tpu.memory_space<vmem>>, vector<1x32xf32>
    %5 = vector.broadcast %4 : vector<1x32xf32> to vector<128x32xf32>
    %6 = arith.addf %3, %5 : vector<128x32xf32>
    %cst_5 = arith.constant 0.000000e+00 : f32
    %7 = vector.broadcast %cst_5 : f32 to vector<128x32xf32>
    %8 = arith.maximumf %6, %7 : vector<128x32xf32>
    %c0_6 = arith.constant 0 : index
    %c0_7 = arith.constant 0 : index
    %9 = vector.load %arg4[%c0_6, %c0_7] : memref<1x32xbf16, #tpu.memory_space<vmem>>, vector<1x32xbf16>
    %10 = arith.truncf %8 : vector<128x32xf32> to vector<128x32xbf16>
    %cst_8 = arith.constant dense<0.000000e+00> : vector<1x128xf32>
    %11 = tpu.matmul %9, %10, %cst_8 {dimension_numbers = #tpu.dot_dimension_numbers<[1], [1], [0], [0], [0, 0, 1, 0], [], []>} : vector<1x32xbf16>, vector<128x32xbf16>, vector<1x128xf32> -> vector<1x128xf32>
    %c0_9 = arith.constant 0 : index
    %12 = memref.load %arg5[%c0_9] : memref<1xf32, #tpu.memory_space<smem>>
    %13 = vector.broadcast %12 : f32 to vector<1x128xf32>
    %14 = arith.addf %11, %13 : vector<1x128xf32>
    %c0_10 = arith.constant 0 : index
    %c0_11 = arith.constant 0 : index
    %15 = vector.load %arg6[%c0_10, %c0_11] : memref<1x128xf32, #tpu.memory_space<vmem>>, vector<1x128xf32>
    tpu.vector_store %arg6[%c0_10, %c0_11], %14 {strides = array<i32>} : memref<1x128xf32, #tpu.memory_space<vmem>>, vector<1x128xf32>,
    return
  }
  func.func @transform_0(%arg0: i32) -> (i32, i32) {
    %c0_i32 = arith.constant 0 : i32
    %c0_i32_0 = arith.constant 0 : i32
    return %arg0, %c0_i32 : i32, i32
  }
  func.func @transform_1(%arg0: i32) -> (i32, i32) {
    %c0_i32 = arith.constant 0 : i32
    %c0_i32_0 = arith.constant 0 : i32
    %c0_i32_1 = arith.constant 0 : i32
    return %c0_i32, %c0_i32_0 : i32, i32
  }
  func.func @transform_2(%arg0: i32) -> (i32, i32) {
    %c0_i32 = arith.constant 0 : i32
    %c0_i32_0 = arith.constant 0 : i32
    %c0_i32_1 = arith.constant 0 : i32
    return %c0_i32, %c0_i32_0 : i32, i32
  }
  func.func @transform_3(%arg0: i32) -> (i32, i32) {
    %c0_i32 = arith.constant 0 : i32
    %c0_i32_0 = arith.constant 0 : i32
    %c0_i32_1 = arith.constant 0 : i32
    return %c0_i32, %c0_i32_0 : i32, i32
  }
  func.func @transform_4(%arg0: i32) -> i32 {
    %c0_i32 = arith.constant 0 : i32
    %c0_i32_0 = arith.constant 0 : i32
    return %c0_i32 : i32
  }
  func.func @transform_5(%arg0: i32) -> (i32, i32) {
    %c0_i32 = arith.constant 0 : i32
    %c0_i32_0 = arith.constant 0 : i32
    return %c0_i32, %arg0 : i32, i32
  }
}

</mosaic_0001>

<llo_original>
// kernel: tpu_custom_call.1
$region0: #{tpu_custom_call.1}
  #allocation0 [shape = 'u32[]', space=smem, size = 0x4, offset = 0x4, fixed_abs, tag = 'smem constant byte address 0x4 - core index']
  #allocation1 [shape = 'u32[144,128]{1,0:T(1,128)}', space=vmem, size = 0x12000, scoped, tag = 'internal scratch']
  #allocation2 [shape = 'f32[1]{0:T(128)S(6)}', space=smem, size = 0x200, scoped, tag = 'scoped memory for tpu_custom_call.1']
  %s0 = inlined_call_operand.hbm [shape: f32[8,32], index: 0, kind: input, shape index: {}]
  %s1 = inlined_call_operand.hbm [shape: bf16[32,32], index: 1, kind: input, shape index: {}]
  %s2 = inlined_call_operand.vmem [shape: f32[1,32], index: 2, kind: input, shape index: {}]
  %s3 = inlined_call_operand.vmem [shape: bf16[1,32], index: 3, kind: input, shape index: {}]
  %s4 = inlined_call_operand.<no memory space> [shape: f32[1], index: 4, kind: input, shape index: {}]
  %s5 = inlined_call_operand.hbm [shape: f32[1,128], index: 5, kind: output, shape index: {}]
  %s6 = sld [smem:[#allocation0]]
  $region38: #{tpu_custom_call.1} parent=0
    _
  %s8 = ssub.s32 1, %s6
  %s9 = scalar_select 0, %s8, %s6
  %10 = sst [smem:[#allocation2]] %s4
  $region1: #{tpu_custom_call.1} parent=0
    #allocation3 [shape = 'u8[65536]{0}', space=vmem, size = 0x10000, scoped, tag = 'input window, operand 0, single buffered']
    #allocation4 [shape = 's32[1]{0}', space=sflag, size = 0x4, scoped, tag = 'scoped memory for tpu_custom_call.1']
    #allocation5 [shape = 's32[1]{0}', space=sflag, size = 0x4, scoped, tag = 'scoped memory for tpu_custom_call.1']
    #allocation6 [shape = 'u8[8192]{0}', space=vmem, size = 0x2000, scoped, tag = 'input window, operand 1, single buffered']
    #allocation7 [shape = 's32[1]{0}', space=sflag, size = 0x4, scoped, tag = 'scoped memory for tpu_custom_call.1']
    #allocation8 [shape = 'u8[512]{0}', space=vmem, size = 0x400, scoped, tag = 'output window, operand 0, single buffered']
    %11 = vsyncpa [#allocation4], 0
    %12 = vsyncpa [#allocation7], 0
    %13 = vsyncpa [#allocation5], 0
    // Predicated region
    $region2: #{tpu_custom_call.1} parent=1 // pred_check
      _
    $region3: #{tpu_custom_call.1} parent=1 // pred_check_branch
      %15 = sbr.rel (0) target = $region5
    $region4: #{tpu_custom_call.1} parent=1 // pred_region
      %s17 = ssub.s32 2048, 128
      %18 = vsyncadd [#allocation4], %s17
      %s19 = sshll.u32 [#allocation3], 4
      %s20 = int_to_ptr.vmem [resolvable:$true] %s19
      %25 = dma.hbm_to_vmem [thread:$0]  %s0, 128, %s20, [#allocation4], 128, 128, 8
    $region5: #{tpu_custom_call.1} parent=1 // pred_fallthru
      _
    // Predicated region
    $region6: #{tpu_custom_call.1} parent=1 // pred_check
      _
    $region7: #{tpu_custom_call.1} parent=1 // pred_check_branch
      %27 = sbr.rel (0) target = $region9
    $region8: #{tpu_custom_call.1} parent=1 // pred_region
      %s29 = ssub.s32 256, 256
      %30 = vsyncadd [#allocation7], %s29
      %s31 = sshll.u32 [#allocation6], 4
      %s32 = int_to_ptr.vmem [resolvable:$true] %s31
      %37 = dma.hbm_to_vmem [thread:$0]  %s1, 256, %s32, [#allocation7], 64, 64, 4
    $region9: #{tpu_custom_call.1} parent=1 // pred_fallthru
      _
    // Predicated region
    $region10: #{tpu_custom_call.1} parent=1 // pred_check
      _
    $region11: #{tpu_custom_call.1} parent=1 // pred_check_branch
      %39 = sbr.rel (0) target = $region13
    $region12: #{tpu_custom_call.1} parent=1 // pred_region
      _
    $region13: #{tpu_custom_call.1} parent=1 // pred_fallthru
      _
    // Predicated region
    $region14: #{tpu_custom_call.1} parent=1 // pred_check
      _
    $region15: #{tpu_custom_call.1} parent=1 // pred_check_branch
      %41 = sbr.rel (0) target = $region17
    $region16: #{tpu_custom_call.1} parent=1 // pred_region
      _
    $region17: #{tpu_custom_call.1} parent=1 // pred_fallthru
      _
    // Predicated region
    $region18: #{tpu_custom_call.1} parent=1 // pred_check
      _
    $region19: #{tpu_custom_call.1} parent=1 // pred_check_branch
      %43 = sbr.rel (0) target = $region21
    $region20: #{tpu_custom_call.1} parent=1 // pred_region
      _
    $region21: #{tpu_custom_call.1} parent=1 // pred_fallthru
      _
    // Predicated region
    $region22: #{tpu_custom_call.1} parent=1 // pred_check
      _
    $region23: #{tpu_custom_call.1} parent=1 // pred_check_branch
      %45 = sbr.rel (0) target = $region25
    $region24: #{tpu_custom_call.1} parent=1 // pred_region
      %46 = dma.done [#allocation4], 2048
    $region25: #{tpu_custom_call.1} parent=1 // pred_fallthru
      _
    // Predicated region
    $region26: #{tpu_custom_call.1} parent=1 // pred_check
      _
    $region27: #{tpu_custom_call.1} parent=1 // pred_check_branch
      %48 = sbr.rel (0) target = $region29
    $region28: #{tpu_custom_call.1} parent=1 // pred_region
      %49 = dma.done [#allocation7], 256
    $region29: #{tpu_custom_call.1} parent=1 // pred_fallthru
      _
    %v51 = vld [vmem:[#allocation3] sm:$0xff]
    %v52 = vld [vmem:[#allocation3 + $0x8] sm:$0xff]
    %v53 = vld [vmem:[#allocation3 + $0x10] sm:$0xff]
    %v54 = vld [vmem:[#allocation3 + $0x18] sm:$0xff]
    %v55 = vld [vmem:[#allocation3 + $0x20] sm:$0xff]
    %v56 = vld [vmem:[#allocation3 + $0x28] sm:$0xff]
    %v57 = vld [vmem:[#allocation3 + $0x30] sm:$0xff]
    %v58 = vld [vmem:[#allocation3 + $0x38] sm:$0xff]
    %v59 = vld [vmem:[#allocation3 + $0x40] sm:$0xff]
    %v60 = vld [vmem:[#allocation3 + $0x48] sm:$0xff]
    %v61 = vld [vmem:[#allocation3 + $0x50] sm:$0xff]
    %v62 = vld [vmem:[#allocation3 + $0x58] sm:$0xff]
    %v63 = vld [vmem:[#allocation3 + $0x60] sm:$0xff]
    %v64 = vld [vmem:[#allocation3 + $0x68] sm:$0xff]
    %v65 = vld [vmem:[#allocation3 + $0x70] sm:$0xff]
    %v66 = vld [vmem:[#allocation3 + $0x78] sm:$0xff]
    %v67 = vpack.c.bf16 %v52, %v51
    %v68 = vpack.c.bf16 %v54, %v53
    %v69 = vpack.c.bf16 %v56, %v55
    %v70 = vpack.c.bf16 %v58, %v57
    %v71 = vpack.c.bf16 %v60, %v59
    %v72 = vpack.c.bf16 %v62, %v61
    %v73 = vpack.c.bf16 %v64, %v63
    %v74 = vpack.c.bf16 %v66, %v65
    %v75 = vld [vmem:[#allocation6] sm:$0xf]
    %v76 = vld [vmem:[#allocation6 + $0x4] sm:$0xf]
    %v77 = vld [vmem:[#allocation6 + $0x8] sm:$0xf]
    %v78 = vld [vmem:[#allocation6 + $0xc] sm:$0xf]
    %v79 = vld [vmem:[%s2] sm:$0x1]
    %v81 = vlaneseq
    %v82 = vshrl.u32 %v81, 7
    %v83 = vsub.s32 0, %v82
    %v84 = vrot.slane %v79, %v83
    %v90 = vunpack.c.l.b16 %v75
    %v91 = vunpack.c.l.b16 %v76
    %v92 = vunpack.c.l.b16 %v77
    %v93 = vunpack.c.l.b16 %v78
    %v94 = vpack.c.b16 %v91, %v90
    %v95 = vpack.c.b16 %v93, %v92
    %vm98 = vcmask 261120
    %v100 = vsel %vm98, %v67, 0
    %v103 = vsel %vm98, %v68, 0
    %v106 = vsel %vm98, %v69, 0
    %v109 = vsel %vm98, %v70, 0
    %v112 = vsel %vm98, %v71, 0
    %v115 = vsel %vm98, %v72, 0
    %v118 = vsel %vm98, %v73, 0
    %v121 = vsel %vm98, %v74, 0
    %123 = vmatprep.subr.bf16.mxu0 0
    %124 = vmatpush1.bf16.msra.mxu0 %v94
    %125 = vmatprep.subr.bf16.mxu0 0
    %126 = vmatpush1.bf16.msra.mxu0 %v95
    %127 = vmatprep.subr.bf16.mxu0 0
    %128 = vmatpush1.bf16.msra.mxu0 0
    %129 = vmatprep.subr.bf16.mxu0 0
    %130 = vmatpush1.bf16.msra.mxu0 0
    %131 = vmatprep.subr.bf16.mxu0 0
    %132 = vmatpush1.bf16.msra.mxu0 0
    %133 = vmatprep.subr.bf16.mxu0 0
    %134 = vmatpush1.bf16.msra.mxu0 0
    %135 = vmatprep.subr.bf16.mxu0 0
    %136 = vmatpush1.bf16.msra.mxu0 0
    %137 = vmatprep.subr.bf16.mxu0 0
    %138 = vmatpush1.bf16.msra.mxu0 0
    %139 = vmatprep.subr.bf16.mxu0 0
    %140 = vmatpush1.bf16.msra.mxu0 0
    %141 = vmatprep.subr.bf16.mxu0 0
    %142 = vmatpush1.bf16.msra.mxu0 0
    %143 = vmatprep.subr.bf16.mxu0 0
    %144 = vmatpush1.bf16.msra.mxu0 0
    %145 = vmatprep.subr.bf16.mxu0 0
    %146 = vmatpush1.bf16.msra.mxu0 0
    %147 = vmatprep.subr.bf16.mxu0 0
    %148 = vmatpush1.bf16.msra.mxu0 0
    %149 = vmatprep.subr.bf16.mxu0 0
    %150 = vmatpush1.bf16.msra.mxu0 0
    %151 = vmatprep.subr.bf16.mxu0 0
    %152 = vmatpush1.bf16.msra.mxu0 0
    %153 = vmatprep.subr.bf16.mxu0 0
    %154 = vmatpush1.bf16.msra.mxu0 0
    %155 = vmatprep.mubr.bf16.mxu0 0
    %156 = vmatmul.mubr.bf16.gmra.mrb[0].mxu0 %v100
    %v157 = vpop.f32.mrb[0].mxu0
    %v158 = vadd.f32 %v84, %v157
    %v159 = vpop.f32.mrb[0].mxu0
    %v160 = vpop.f32.mrb[0].mxu0
    %v161 = vadd.f32 %v84, %v160
    %v162 = vpop.f32.mrb[0].mxu0
    %163 = vmatprep.mubr.bf16.mxu0 0
    %164 = vmatmul.mubr.bf16.gmra.mrb[0].mxu0 %v103
    %v165 = vpop.f32.mrb[0].mxu0
    %v166 = vadd.f32 %v84, %v165
    %v167 = vpop.f32.mrb[0].mxu0
    %v168 = vpop.f32.mrb[0].mxu0
    %v169 = vadd.f32 %v84, %v168
    %v170 = vpop.f32.mrb[0].mxu0
    %171 = vmatprep.mubr.bf16.mxu0 0
    %172 = vmatmul.mubr.bf16.gmra.mrb[0].mxu0 %v106
    %v173 = vpop.f32.mrb[0].mxu0
    %v174 = vadd.f32 %v84, %v173
    %v175 = vpop.f32.mrb[0].mxu0
    %v176 = vpop.f32.mrb[0].mxu0
    %v177 = vadd.f32 %v84, %v176
    %v178 = vpop.f32.mrb[0].mxu0
    %179 = vmatprep.mubr.bf16.mxu0 0
    %180 = vmatmul.mubr.bf16.gmra.mrb[0].mxu0 %v109
    %v181 = vpop.f32.mrb[0].mxu0
    %v182 = vadd.f32 %v84, %v181
    %v183 = vpop.f32.mrb[0].mxu0
    %v184 = vpop.f32.mrb[0].mxu0
    %v185 = vadd.f32 %v84, %v184
    %v186 = vpop.f32.mrb[0].mxu0
    %187 = vmatprep.mubr.bf16.mxu0 0
    %188 = vmatmul.mubr.bf16.gmra.mrb[0].mxu0 %v112
    %v189 = vpop.f32.mrb[0].mxu0
    %v190 = vadd.f32 %v84, %v189
    %v191 = vpop.f32.mrb[0].mxu0
    %v192 = vpop.f32.mrb[0].mxu0
    %v193 = vadd.f32 %v84, %v192
    %v194 = vpop.f32.mrb[0].mxu0
    %195 = vmatprep.mubr.bf16.mxu0 0
    %196 = vmatmul.mubr.bf16.gmra.mrb[0].mxu0 %v115
    %v197 = vpop.f32.mrb[0].mxu0
    %v198 = vadd.f32 %v84, %v197
    %v199 = vpop.f32.mrb[0].mxu0
    %v200 = vpop.f32.mrb[0].mxu0
    %v201 = vadd.f32 %v84, %v200
    %v202 = vpop.f32.mrb[0].mxu0
    %203 = vmatprep.mubr.bf16.mxu0 0
    %204 = vmatmul.mubr.bf16.gmra.mrb[0].mxu0 %v118
    %v205 = vpop.f32.mrb[0].mxu0
    %v206 = vadd.f32 %v84, %v205
    %v207 = vpop.f32.mrb[0].mxu0
    %v208 = vpop.f32.mrb[0].mxu0
    %v209 = vadd.f32 %v84, %v208
    %v210 = vpop.f32.mrb[0].mxu0
    %211 = vmatprep.mubr.bf16.mxu0 0
    %212 = vmatmul.mubr.bf16.gmra.mrb[0].mxu0 %v121
    %v213 = vpop.f32.mrb[0].mxu0
    %v214 = vadd.f32 %v84, %v213
    %v215 = vpop.f32.mrb[0].mxu0
    %v216 = vpop.f32.mrb[0].mxu0
    %v217 = vadd.f32 %v84, %v216
    %v218 = vpop.f32.mrb[0].mxu0
    %219 = vdwg.mxu0
    %v220 = vmax.f32 %v158, 0.0
    %v221 = vmax.f32 %v161, 0.0
    %v222 = vmax.f32 %v166, 0.0
    %v223 = vmax.f32 %v169, 0.0
    %v224 = vmax.f32 %v174, 0.0
    %v225 = vmax.f32 %v177, 0.0
    %v226 = vmax.f32 %v182, 0.0
    %v227 = vmax.f32 %v185, 0.0
    %v228 = vmax.f32 %v190, 0.0
    %v229 = vmax.f32 %v193, 0.0
    %v230 = vmax.f32 %v198, 0.0
    %v231 = vmax.f32 %v201, 0.0
    %v232 = vmax.f32 %v206, 0.0
    %v233 = vmax.f32 %v209, 0.0
    %v234 = vmax.f32 %v214, 0.0
    %v235 = vmax.f32 %v217, 0.0
    %v236 = vld [vmem:[%s3] sm:$0x1]
    %v237 = vpack.c.bf16 %v221, %v220
    %v238 = vpack.c.bf16 %v223, %v222
    %v239 = vpack.c.bf16 %v225, %v224
    %v240 = vpack.c.bf16 %v227, %v226
    %v241 = vpack.c.bf16 %v229, %v228
    %v242 = vpack.c.bf16 %v231, %v230
    %v243 = vpack.c.bf16 %v233, %v232
    %v244 = vpack.c.bf16 %v235, %v234
    %s245 = sld [smem:[#allocation2]]
    %v246 = vstv %s245
    %v248 = vsel %vm98, %v236, 0
    %v251 = vsel %vm98, %v237, 0
    %v254 = vsel %vm98, %v238, 0
    %v257 = vsel %vm98, %v239, 0
    %v260 = vsel %vm98, %v240, 0
    %v263 = vsel %vm98, %v241, 0
    %v266 = vsel %vm98, %v242, 0
    %v269 = vsel %vm98, %v243, 0
    %v272 = vsel %vm98, %v244, 0
    %274 = vmatprep.subr.bf16.mxu0 0
    %275 = vmatpush1.bf16.xpose.msra.mxu0 %v251
    %276 = vmatprep.subr.bf16.mxu0 0
    %277 = vmatpush1.bf16.xpose.msra.mxu0 %v254
    %278 = vmatprep.subr.bf16.mxu0 0
    %279 = vmatpush1.bf16.xpose.msra.mxu0 %v257
    %280 = vmatprep.subr.bf16.mxu0 0
    %281 = vmatpush1.bf16.xpose.msra.mxu0 %v260
    %282 = vmatprep.subr.bf16.mxu0 0
    %283 = vmatpush1.bf16.xpose.msra.mxu0 %v263
    %284 = vmatprep.subr.bf16.mxu0 0
    %285 = vmatpush1.bf16.xpose.msra.mxu0 %v266
    %286 = vmatprep.subr.bf16.mxu0 0
    %287 = vmatpush1.bf16.xpose.msra.mxu0 %v269
    %288 = vmatprep.subr.bf16.mxu0 0
    %289 = vmatpush1.bf16.xpose.msra.mxu0 %v272
    %290 = vmatprep.subr.bf16.mxu0 0
    %291 = vmatpush1.bf16.xpose.msra.mxu0 0
    %292 = vmatprep.subr.bf16.mxu0 0
    %293 = vmatpush1.bf16.xpose.msra.mxu0 0
    %294 = vmatprep.subr.bf16.mxu0 0
    %295 = vmatpush1.bf16.xpose.msra.mxu0 0
    %296 = vmatprep.subr.bf16.mxu0 0
    %297 = vmatpush1.bf16.xpose.msra.mxu0 0
    %298 = vmatprep.subr.bf16.mxu0 0
    %299 = vmatpush1.bf16.xpose.msra.mxu0 0
    %300 = vmatprep.subr.bf16.mxu0 0
    %301 = vmatpush1.bf16.xpose.msra.mxu0 0
    %302 = vmatprep.subr.bf16.mxu0 0
    %303 = vmatpush1.bf16.xpose.msra.mxu0 0
    %304 = vmatprep.subr.bf16.mxu0 0
    %305 = vmatpush1.bf16.xpose.msra.mxu0 0
    %306 = vmatprep.mubr.bf16.mxu0 0
    %307 = vmatmul.mubr.bf16.gmra.mrb[0].mxu0 %v248
    %v308 = vpop.f32.mrb[0].mxu0
    %v309 = vadd.f32 %v246, %v308
    %v310 = vpop.f32.mrb[0].mxu0
    %v311 = vpop.f32.mrb[0].mxu0
    %v312 = vpop.f32.mrb[0].mxu0
    %313 = vdwg.mxu0
    %314 = vst [vmem:[#allocation8] sm:$0x1] %v309
    // Predicated region
    $region30: #{tpu_custom_call.1} parent=1 // pred_check
      _
    $region31: #{tpu_custom_call.1} parent=1 // pred_check_branch
      %316 = sbr.rel (0) target = $region33
    $region32: #{tpu_custom_call.1} parent=1 // pred_region
      %s318 = ssub.s32 16, 16
      %319 = vsyncadd [#allocation5], %s318
      %s321 = sshll.u32 [#allocation8], 4
      %s322 = int_to_ptr.vmem [resolvable:$true] %s321
      %324 = dma.vmem_to_hbm [thread:$0]  %s322, 16, %s5, [#allocation5]
    $region33: #{tpu_custom_call.1} parent=1 // pred_fallthru
      _
    // Predicated region
    $region34: #{tpu_custom_call.1} parent=1 // pred_check
      _
    $region35: #{tpu_custom_call.1} parent=1 // pred_check_branch
      %326 = sbr.rel (0) target = $region37
    $region36: #{tpu_custom_call.1} parent=1 // pred_region
      %327 = dma.done [#allocation5], 16
    $region37: #{tpu_custom_call.1} parent=1 // pred_fallthru
      _
    %328 = vsyncpa [#allocation4], 1
    %329 = vsyncpa [#allocation7], 1
    %330 = vsyncpa [#allocation5], 1

</llo_original>
